<compile_context>
chip_gen: v6e
topology: v6e:2x2x1
jax: 0.10.0
libtpu: 0.0.40
codegen_flags: <defaults>
</compile_context>

<pallas_src>
import jax
import jax.numpy as jnp
from jax.experimental import pallas as pl
from jax.experimental.pallas import tpu as pltpu


def _mlp_embedder_kernel(x_ref, w1_ref, b1_ref, w2_ref, b2_ref, o_ref):
    # x_ref:  (TM, Din)   w1_ref: (Din, H)   b1_ref/b2_ref: (1, H)
    # w2_ref: (H, H)      o_ref:  (TM, H)
    x = x_ref[...]
    h = jnp.dot(x, w1_ref[...],
                preferred_element_type=jnp.float32,
                precision=jax.lax.Precision.HIGHEST)
    h = h + b1_ref[...]
    h = h * jax.nn.sigmoid(h)                      # SiLU (EUP transcendental)
    y = jnp.dot(h.astype(w2_ref.dtype), w2_ref[...],
                preferred_element_type=jnp.float32,
                precision=jax.lax.Precision.HIGHEST)
    y = y + b2_ref[...]
    o_ref[...] = y.astype(o_ref.dtype)


def mlp_embedder(x, w1, b1, w2, b2, *, tile_m=256):
    """x: (..., in_dim) -> (..., hidden).  w1: (in_dim, hidden), w2: (hidden, hidden)."""
    orig_lead = x.shape[:-1]
    in_dim = x.shape[-1]
    hidden = w1.shape[1]
    assert w1.shape == (in_dim, hidden)
    assert w2.shape == (hidden, hidden)

    x2 = x.reshape(-1, in_dim)
    m = x2.shape[0]

    if m <= tile_m:
        tm = m                      # single full block (full-dim exception to (8,128))
        m_pad = m
    else:
        tm = tile_m                 # multiple of 8 -> valid sublane tiling
        m_pad = pl.cdiv(m, tm) * tm
        if m_pad != m:
            x2 = jnp.pad(x2, ((0, m_pad - m), (0, 0)))

    grid = (m_pad // tm,)
    b1_2d = b1.reshape(1, hidden)
    b2_2d = b2.reshape(1, hidden)

    # VMEM budget: double-buffered x / out row tiles + resident weights/biases.
    itemsize = 4
    vmem_bytes = int(
        2 * (tm * in_dim + tm * hidden) * itemsize
        + (in_dim * hidden + hidden * hidden + 2 * hidden) * itemsize
        + (2 << 20))
    vmem_bytes = max(4 << 20, min(vmem_bytes, 64 << 20))

    out = pl.pallas_call(
        _mlp_embedder_kernel,
        out_shape=jax.ShapeDtypeStruct((m_pad, hidden), x.dtype),
        grid=grid,
        in_specs=[
            pl.BlockSpec((tm, in_dim), lambda i: (i, 0)),       # x rows (tiled)
            pl.BlockSpec((in_dim, hidden), lambda i: (0, 0)),   # W1 (resident)
            pl.BlockSpec((1, hidden), lambda i: (0, 0)),        # b1 (resident)
            pl.BlockSpec((hidden, hidden), lambda i: (0, 0)),   # W2 (resident)
            pl.BlockSpec((1, hidden), lambda i: (0, 0)),        # b2 (resident)
        ],
        out_specs=pl.BlockSpec((tm, hidden), lambda i: (i, 0)),
        compiler_params=pltpu.CompilerParams(
            dimension_semantics=("parallel",),
            vmem_limit_bytes=vmem_bytes),
    )(x2, w1, b1_2d, w2, b2_2d)

    out = out[:m]
    return out.reshape(*orig_lead, hidden)


def _reference_mlp_embedder(x, w1, b1, w2, b2):
    """Pure-JAX reference mirroring the PyTorch module (float32)."""
    h = jnp.dot(x, w1, precision=jax.lax.Precision.HIGHEST) + b1
    h = jax.nn.silu(h)
    return jnp.dot(h, w2, precision=jax.lax.Precision.HIGHEST) + b2


if __name__ == "__main__":
    # Small, module-consistent configuration: batch=2, seq=8, in_dim=32, hidden=64.
    B, S, in_dim, hidden = 2, 8, 32, 64

    key = jax.random.PRNGKey(0)
    k1, k2, k3, k4, k5 = jax.random.split(key, 5)
    x = jax.random.normal(k1, (B, S, in_dim), jnp.float32)
    w1 = jax.random.normal(k2, (in_dim, hidden), jnp.float32) / jnp.sqrt(jnp.float32(in_dim))
    b1 = 0.1 * jax.random.normal(k3, (hidden,), jnp.float32)
    w2 = jax.random.normal(k4, (hidden, hidden), jnp.float32) / jnp.sqrt(jnp.float32(hidden))
    b2 = 0.1 * jax.random.normal(k5, (hidden,), jnp.float32)

    out = mlp_embedder(x, w1, b1, w2, b2)
    out = jax.block_until_ready(out)

    ref = _reference_mlp_embedder(x, w1, b1, w2, b2)
    assert out.shape == (B, S, hidden)
    assert out.dtype == jnp.float32
    assert jnp.allclose(out, ref, atol=1e-4, rtol=1e-4)

    print("KERNEL_OK")
</pallas_src>

<mosaic_0001>
module attributes {stable_mosaic.version = 11 : i64} {
  func.func @_mlp_embedder_kernel(%arg0: i32, %arg1: memref<16x32xf32, #tpu.memory_space<vmem>>, %arg2: memref<32x64xf32, #tpu.memory_space<vmem>>, %arg3: memref<1x64xf32, #tpu.memory_space<vmem>>, %arg4: memref<64x64xf32, #tpu.memory_space<vmem>>, %arg5: memref<1x64xf32, #tpu.memory_space<vmem>>, %arg6: memref<16x64xf32, #tpu.memory_space<vmem>>) attributes {dimension_semantics = [#tpu.dimension_semantics<parallel>], iteration_bounds = array<i64: 1>, scalar_prefetch = 0 : i64, scratch_operands = 0 : i64, tpu.core_type = #tpu.core_type<tc>, window_params = [{transform_indices = @transform_0, window_bounds = array<i64: 16, 32>}, {pipeline_mode = #tpu.pipeline_mode<synchronous>, transform_indices = @transform_1, window_bounds = array<i64: 32, 64>}, {pipeline_mode = #tpu.pipeline_mode<synchronous>, transform_indices = @transform_2, window_bounds = array<i64: 1, 64>}, {pipeline_mode = #tpu.pipeline_mode<synchronous>, transform_indices = @transform_3, window_bounds = array<i64: 64, 64>}, {pipeline_mode = #tpu.pipeline_mode<synchronous>, transform_indices = @transform_4, window_bounds = array<i64: 1, 64>}, {transform_indices = @transform_5, window_bounds = array<i64: 16, 64>}]} {
    %c0 = arith.constant 0 : index
    %c0_0 = arith.constant 0 : index
    %0 = vector.load %arg1[%c0, %c0_0] : memref<16x32xf32, #tpu.memory_space<vmem>>, vector<16x32xf32>
    %c0_1 = arith.constant 0 : index
    %c0_2 = arith.constant 0 : index
    %1 = vector.load %arg2[%c0_1, %c0_2] : memref<32x64xf32, #tpu.memory_space<vmem>>, vector<32x64xf32>
    %cst = arith.constant dense<0.000000e+00> : vector<16x64xf32>
    %2 = tpu.matmul %0, %1, %cst {dimension_numbers = #tpu.dot_dimension_numbers<[1], [0], [0], [1], [0, 0, 1, 1], [], []>, precision = #tpu.contract_precision<fp32>} : vector<16x32xf32>, vector<32x64xf32>, vector<16x64xf32> -> vector<16x64xf32>
    %c0_3 = arith.constant 0 : index
    %c0_4 = arith.constant 0 : index
    %3 = vector.load %arg3[%c0_3, %c0_4] : memref<1x64xf32, #tpu.memory_space<vmem>>, vector<1x64xf32>
    %4 = vector.broadcast %3 : vector<1x64xf32> to vector<16x64xf32>
    %5 = arith.addf %2, %4 : vector<16x64xf32>
    %6 = arith.negf %5 : vector<16x64xf32>
    %7 = math.exp %6 : vector<16x64xf32>
    %cst_5 = arith.constant 1.000000e+00 : f32
    %8 = vector.broadcast %cst_5 : f32 to vector<16x64xf32>
    %9 = arith.addf %8, %7 : vector<16x64xf32>
    %10 = arith.divf %8, %9 : vector<16x64xf32>
    %11 = arith.mulf %5, %10 : vector<16x64xf32>
    %c0_6 = arith.constant 0 : index
    %c0_7 = arith.constant 0 : index
    %12 = vector.load %arg4[%c0_6, %c0_7] : memref<64x64xf32, #tpu.memory_space<vmem>>, vector<64x64xf32>
    %cst_8 = arith.constant dense<0.000000e+00> : vector<16x64xf32>
    %13 = tpu.matmul %11, %12, %cst_8 {dimension_numbers = #tpu.dot_dimension_numbers<[1], [0], [0], [1], [0, 0, 1, 1], [], []>, precision = #tpu.contract_precision<fp32>} : vector<16x64xf32>, vector<64x64xf32>, vector<16x64xf32> -> vector<16x64xf32>
    %c0_9 = arith.constant 0 : index
    %c0_10 = arith.constant 0 : index
    %14 = vector.load %arg5[%c0_9, %c0_10] : memref<1x64xf32, #tpu.memory_space<vmem>>, vector<1x64xf32>
    %15 = vector.broadcast %14 : vector<1x64xf32> to vector<16x64xf32>
    %16 = arith.addf %13, %15 : vector<16x64xf32>
    %c0_11 = arith.constant 0 : index
    %c0_12 = arith.constant 0 : index
    %17 = vector.load %arg6[%c0_11, %c0_12] : memref<16x64xf32, #tpu.memory_space<vmem>>, vector<16x64xf32>
    tpu.vector_store %arg6[%c0_11, %c0_12], %16 {strides = array<i32>} : memref<16x64xf32, #tpu.memory_space<vmem>>, vector<16x64xf32>,
    return
  }
  func.func @transform_0(%arg0: i32) -> (i32, i32) {
    %c0_i32 = arith.constant 0 : i32
    %c0_i32_0 = arith.constant 0 : i32
    return %arg0, %c0_i32 : i32, i32
  }
  func.func @transform_1(%arg0: i32) -> (i32, i32) {
    %c0_i32 = arith.constant 0 : i32
    %c0_i32_0 = arith.constant 0 : i32
    %c0_i32_1 = arith.constant 0 : i32
    return %c0_i32, %c0_i32_0 : i32, i32
  }
  func.func @transform_2(%arg0: i32) -> (i32, i32) {
    %c0_i32 = arith.constant 0 : i32
    %c0_i32_0 = arith.constant 0 : i32
    %c0_i32_1 = arith.constant 0 : i32
    return %c0_i32, %c0_i32_0 : i32, i32
  }
  func.func @transform_3(%arg0: i32) -> (i32, i32) {
    %c0_i32 = arith.constant 0 : i32
    %c0_i32_0 = arith.constant 0 : i32
    %c0_i32_1 = arith.constant 0 : i32
    return %c0_i32, %c0_i32_0 : i32, i32
  }
  func.func @transform_4(%arg0: i32) -> (i32, i32) {
    %c0_i32 = arith.constant 0 : i32
    %c0_i32_0 = arith.constant 0 : i32
    %c0_i32_1 = arith.constant 0 : i32
    return %c0_i32, %c0_i32_0 : i32, i32
  }
  func.func @transform_5(%arg0: i32) -> (i32, i32) {
    %c0_i32 = arith.constant 0 : i32
    %c0_i32_0 = arith.constant 0 : i32
    return %arg0, %c0_i32 : i32, i32
  }
}

</mosaic_0001>

<llo_original>
// kernel: tpu_custom_call.1
$region0: #{tpu_custom_call.1}
  #allocation0 [shape = 'u32[]', space=smem, size = 0x4, offset = 0x4, fixed_abs, tag = 'smem constant byte address 0x4 - core index']
  #allocation1 [shape = 'u32[144,128]{1,0:T(1,128)}', space=vmem, size = 0x12000, scoped, tag = 'internal scratch']
  %s0 = inlined_call_operand.hbm [shape: f32[16,32], index: 0, kind: input, shape index: {}]
  %s1 = inlined_call_operand.hbm [shape: f32[32,64], index: 1, kind: input, shape index: {}]
  %s2 = inlined_call_operand.vmem [shape: f32[1,64], index: 2, kind: input, shape index: {}]
  %s3 = inlined_call_operand.hbm [shape: f32[64,64], index: 3, kind: input, shape index: {}]
  %s4 = inlined_call_operand.vmem [shape: f32[1,64], index: 4, kind: input, shape index: {}]
  %s5 = inlined_call_operand.hbm [shape: f32[16,64], index: 5, kind: output, shape index: {}]
  %s6 = sld [smem:[#allocation0]]
  $region42: #{tpu_custom_call.1} parent=0
    _
  %s8 = ssub.s32 1, %s6
  %s9 = scalar_select 0, %s8, %s6
  $region1: #{tpu_custom_call.1} parent=0
    #allocation2 [shape = 'u8[8192]{0}', space=vmem, size = 0x2000, scoped, tag = 'input window, operand 0, single buffered']
    #allocation3 [shape = 's32[1]{0}', space=sflag, size = 0x4, scoped, tag = 'scoped memory for tpu_custom_call.1']
    #allocation4 [shape = 's32[1]{0}', space=sflag, size = 0x4, scoped, tag = 'scoped memory for tpu_custom_call.1']
    #allocation5 [shape = 'u8[16384]{0}', space=vmem, size = 0x4000, scoped, tag = 'input window, operand 1, single buffered']
    #allocation6 [shape = 's32[1]{0}', space=sflag, size = 0x4, scoped, tag = 'scoped memory for tpu_custom_call.1']
    #allocation7 [shape = 'u8[32768]{0}', space=vmem, size = 0x8000, scoped, tag = 'input window, operand 3, single buffered']
    #allocation8 [shape = 'u8[8192]{0}', space=vmem, size = 0x2000, scoped, tag = 'output window, operand 0, single buffered']
    %10 = vsyncpa [#allocation3], 0
    %11 = vsyncpa [#allocation6], 0
    %12 = vsyncpa [#allocation4], 0
    // Predicated region
    $region2: #{tpu_custom_call.1} parent=1 // pred_check
      _
    $region3: #{tpu_custom_call.1} parent=1 // pred_check_branch
      %14 = sbr.rel (0) target = $region5
    $region4: #{tpu_custom_call.1} parent=1 // pred_region
      %s16 = ssub.s32 256, 256
      %17 = vsyncadd [#allocation3], %s16
      %s18 = sshll.u32 [#allocation2], 4
      %s19 = int_to_ptr.vmem [resolvable:$true] %s18
      %24 = dma.hbm_to_vmem [thread:$0]  %s0, 256, %s19, [#allocation3], 128, 128, 8
    $region5: #{tpu_custom_call.1} parent=1 // pred_fallthru
      _
    // Predicated region
    $region6: #{tpu_custom_call.1} parent=1 // pred_check
      _
    $region7: #{tpu_custom_call.1} parent=1 // pred_check_branch
      %26 = sbr.rel (0) target = $region9
    $region8: #{tpu_custom_call.1} parent=1 // pred_region
      %s28 = ssub.s32 512, 512
      %29 = vsyncadd [#allocation6], %s28
      %s30 = sshll.u32 [#allocation5], 4
      %s31 = int_to_ptr.vmem [resolvable:$true] %s30
      %36 = dma.hbm_to_vmem [thread:$0]  %s1, 512, %s31, [#allocation6], 128, 128, 8
    $region9: #{tpu_custom_call.1} parent=1 // pred_fallthru
      _
    // Predicated region
    $region10: #{tpu_custom_call.1} parent=1 // pred_check
      _
    $region11: #{tpu_custom_call.1} parent=1 // pred_check_branch
      %38 = sbr.rel (0) target = $region13
    $region12: #{tpu_custom_call.1} parent=1 // pred_region
      _
    $region13: #{tpu_custom_call.1} parent=1 // pred_fallthru
      _
    // Predicated region
    $region14: #{tpu_custom_call.1} parent=1 // pred_check
      _
    $region15: #{tpu_custom_call.1} parent=1 // pred_check_branch
      %40 = sbr.rel (0) target = $region17
    $region16: #{tpu_custom_call.1} parent=1 // pred_region
      %s42 = ssub.s32 1024, 1024
      %43 = vsyncadd [#allocation6], %s42
      %s44 = sshll.u32 [#allocation7], 4
      %s45 = int_to_ptr.vmem [resolvable:$true] %s44
      %50 = dma.hbm_to_vmem [thread:$0]  %s3, 1024, %s45, [#allocation6], 128, 128, 8
    $region17: #{tpu_custom_call.1} parent=1 // pred_fallthru
      _
    // Predicated region
    $region18: #{tpu_custom_call.1} parent=1 // pred_check
      _
    $region19: #{tpu_custom_call.1} parent=1 // pred_check_branch
      %52 = sbr.rel (0) target = $region21
    $region20: #{tpu_custom_call.1} parent=1 // pred_region
      _
    $region21: #{tpu_custom_call.1} parent=1 // pred_fallthru
      _
    // Predicated region
    $region22: #{tpu_custom_call.1} parent=1 // pred_check
      _
    $region23: #{tpu_custom_call.1} parent=1 // pred_check_branch
      %54 = sbr.rel (0) target = $region25
    $region24: #{tpu_custom_call.1} parent=1 // pred_region
      %55 = dma.done [#allocation3], 256
    $region25: #{tpu_custom_call.1} parent=1 // pred_fallthru
      _
    // Predicated region
    $region26: #{tpu_custom_call.1} parent=1 // pred_check
      _
    $region27: #{tpu_custom_call.1} parent=1 // pred_check_branch
      %57 = sbr.rel (0) target = $region29
    $region28: #{tpu_custom_call.1} parent=1 // pred_region
      %58 = dma.done [#allocation6], 512
    $region29: #{tpu_custom_call.1} parent=1 // pred_fallthru
      _
    // Predicated region
    $region30: #{tpu_custom_call.1} parent=1 // pred_check
      _
    $region31: #{tpu_custom_call.1} parent=1 // pred_check_branch
      %60 = sbr.rel (0) target = $region33
    $region32: #{tpu_custom_call.1} parent=1 // pred_region
      %61 = dma.done [#allocation6], 1024
    $region33: #{tpu_custom_call.1} parent=1 // pred_fallthru
      _
    %v62 = vld [vmem:[#allocation2] sm:$0xff]
    %v63 = vld [vmem:[#allocation2 + $0x8] sm:$0xff]
    %v64 = vld [vmem:[#allocation5] sm:$0xff]
    %v65 = vld [vmem:[#allocation5 + $0x8] sm:$0xff]
    %v66 = vld [vmem:[#allocation5 + $0x10] sm:$0xff]
    %v67 = vld [vmem:[#allocation5 + $0x18] sm:$0xff]
    %v68 = vld [vmem:[%s2] sm:$0x1]
    %v70 = vlaneseq
    %v71 = vshrl.u32 %v70, 7
    %v72 = vsub.s32 0, %v71
    %v73 = vrot.slane %v68, %v72
    %vm75 = vcmask 261120
    %v77 = vsel %vm75, %v62, 0
    %v80 = vsel %vm75, %v63, 0
    %82 = vmatprep.subr.mxu0 0.0
    %83 = vmatpush1.msra.mxu0 0.0
    %84 = vmatprep.subr.mxu0 0.0
    %85 = vmatpush1.msra.mxu0 0.0
    %86 = vmatprep.subr.mxu0 0.0
    %87 = vmatpush1.msra.mxu0 0.0
    %88 = vmatprep.subr.mxu0 0.0
    %89 = vmatpush1.msra.mxu0 0.0
    %90 = vmatprep.subr.mxu0 0.0
    %91 = vmatpush1.msra.mxu0 0.0
    %92 = vmatprep.subr.mxu0 0.0
    %93 = vmatpush1.msra.mxu0 0.0
    %94 = vmatprep.subr.mxu0 0.0
    %95 = vmatpush1.msra.mxu0 0.0
    %96 = vmatprep.subr.mxu0 0.0
    %97 = vmatpush1.msra.mxu0 0.0
    %98 = vmatprep.subr.mxu0 0.0
    %99 = vmatpush1.msra.mxu0 0.0
    %100 = vmatprep.subr.mxu0 0.0
    %101 = vmatpush1.msra.mxu0 0.0
    %102 = vmatprep.subr.mxu0 0.0
    %103 = vmatpush1.msra.mxu0 0.0
    %104 = vmatprep.subr.mxu0 0.0
    %105 = vmatpush1.msra.mxu0 0.0
    %106 = vmatprep.subr.mxu0 0.0
    %v107 = vand.u32 %v67, 4294901760
    %108 = vmatpush1.msra.mxu0 %v107
    %109 = vmatprep.subr.mxu0 0.0
    %v110 = vand.u32 %v66, 4294901760
    %111 = vmatpush1.msra.mxu0 %v110
    %112 = vmatprep.subr.mxu0 0.0
    %v113 = vand.u32 %v65, 4294901760
    %114 = vmatpush1.msra.mxu0 %v113
    %115 = vmatprep.subr.mxu0 0.0
    %v116 = vand.u32 %v64, 4294901760
    %117 = vmatpush1.msra.mxu0 %v116
    %118 = vmatprep.subr.mxu0 0.0
    %119 = vmatpush2.msra.mxu0 0.0
    %120 = vmatprep.subr.mxu0 0.0
    %121 = vmatpush2.msra.mxu0 0.0
    %122 = vmatprep.subr.mxu0 0.0
    %123 = vmatpush2.msra.mxu0 0.0
    %124 = vmatprep.subr.mxu0 0.0
    %125 = vmatpush2.msra.mxu0 0.0
    %126 = vmatprep.subr.mxu0 0.0
    %127 = vmatpush2.msra.mxu0 0.0
    %128 = vmatprep.subr.mxu0 0.0
    %129 = vmatpush2.msra.mxu0 0.0
    %130 = vmatprep.subr.mxu0 0.0
    %131 = vmatpush2.msra.mxu0 0.0
    %132 = vmatprep.subr.mxu0 0.0
    %133 = vmatpush2.msra.mxu0 0.0
    %134 = vmatprep.subr.mxu0 0.0
    %135 = vmatpush2.msra.mxu0 0.0
    %136 = vmatprep.subr.mxu0 0.0
    %137 = vmatpush2.msra.mxu0 0.0
    %138 = vmatprep.subr.mxu0 0.0
    %139 = vmatpush2.msra.mxu0 0.0
    %140 = vmatprep.subr.mxu0 0.0
    %141 = vmatpush2.msra.mxu0 0.0
    %142 = vmatprep.subr.mxu0 0.0
    %143 = vmatpush2.msra.mxu0 0.0
    %144 = vmatprep.subr.mxu0 0.0
    %145 = vmatpush2.msra.mxu0 0.0
    %146 = vmatprep.subr.mxu0 0.0
    %147 = vmatpush2.msra.mxu0 0.0
    %148 = vmatprep.subr.mxu0 0.0
    %149 = vmatpush2.msra.mxu0 0.0
    %150 = vmatprep.mubr.f32.mxu0 0.0
    %v151 = vand.u32 %v77, 4294901760
    %v152 = vsub.f32 %v77, %v151
    %v153 = vand.u32 %v152, 4294901760
    %v154 = vsub.f32 %v152, %v153
    %v155 = vand.u32 %v154, 4294901760
    %156 = vmatmul.mubr.f32.gmra.mxu0 %v155
    %v157 = vpop.f32.mrf.mxu0
    %v158 = vadd.f32 %v73, %v157
    %v159 = vpop.f32.mrf.mxu0
    %160 = vmatprep.mubr.f32.mxu0 0.0
    %v161 = vand.u32 %v80, 4294901760
    %v162 = vsub.f32 %v80, %v161
    %v163 = vand.u32 %v162, 4294901760
    %v164 = vsub.f32 %v162, %v163
    %v165 = vand.u32 %v164, 4294901760
    %166 = vmatmul.mubr.f32.gmra.mxu0 %v165
    %v167 = vpop.f32.mrf.mxu0
    %v168 = vadd.f32 %v73, %v167
    %v169 = vpop.f32.mrf.mxu0
    %170 = vdwg.mxu0
    %171 = vmatprep.subr.mxu0 0.0
    %172 = vmatpush1.msra.mxu0 0.0
    %173 = vmatprep.subr.mxu0 0.0
    %174 = vmatpush1.msra.mxu0 0.0
    %175 = vmatprep.subr.mxu0 0.0
    %176 = vmatpush1.msra.mxu0 0.0
    %177 = vmatprep.subr.mxu0 0.0
    %178 = vmatpush1.msra.mxu0 0.0
    %179 = vmatprep.subr.mxu0 0.0
    %180 = vmatpush1.msra.mxu0 0.0
    %181 = vmatprep.subr.mxu0 0.0
    %182 = vmatpush1.msra.mxu0 0.0
    %183 = vmatprep.subr.mxu0 0.0
    %184 = vmatpush1.msra.mxu0 0.0
    %185 = vmatprep.subr.mxu0 0.0
    %186 = vmatpush1.msra.mxu0 0.0
    %187 = vmatprep.subr.mxu0 0.0
    %188 = vmatpush1.msra.mxu0 0.0
    %189 = vmatprep.subr.mxu0 0.0
    %190 = vmatpush1.msra.mxu0 0.0
    %191 = vmatprep.subr.mxu0 0.0
    %192 = vmatpush1.msra.mxu0 0.0
    %193 = vmatprep.subr.mxu0 0.0
    %194 = vmatpush1.msra.mxu0 0.0
    %195 = vmatprep.subr.mxu0 0.0
    %v196 = vand.u32 %v67, 4294901760
    %v197 = vsub.f32 %v67, %v196
    %v198 = vand.u32 %v197, 4294901760
    %v199 = vsub.f32 %v197, %v198
    %v200 = vand.u32 %v199, 4294901760
    %201 = vmatpush1.msra.mxu0 %v200
    %202 = vmatprep.subr.mxu0 0.0
    %v203 = vand.u32 %v66, 4294901760
    %v204 = vsub.f32 %v66, %v203
    %v205 = vand.u32 %v204, 4294901760
    %v206 = vsub.f32 %v204, %v205
    %v207 = vand.u32 %v206, 4294901760
    %208 = vmatpush1.msra.mxu0 %v207
    %209 = vmatprep.subr.mxu0 0.0
    %v210 = vand.u32 %v65, 4294901760
    %v211 = vsub.f32 %v65, %v210
    %v212 = vand.u32 %v211, 4294901760
    %v213 = vsub.f32 %v211, %v212
    %v214 = vand.u32 %v213, 4294901760
    %215 = vmatpush1.msra.mxu0 %v214
    %216 = vmatprep.subr.mxu0 0.0
    %v217 = vand.u32 %v64, 4294901760
    %v218 = vsub.f32 %v64, %v217
    %v219 = vand.u32 %v218, 4294901760
    %v220 = vsub.f32 %v218, %v219
    %v221 = vand.u32 %v220, 4294901760
    %222 = vmatpush1.msra.mxu0 %v221
    %223 = vmatprep.subr.mxu0 0.0
    %224 = vmatpush2.msra.mxu0 0.0
    %225 = vmatprep.subr.mxu0 0.0
    %226 = vmatpush2.msra.mxu0 0.0
    %227 = vmatprep.subr.mxu0 0.0
    %228 = vmatpush2.msra.mxu0 0.0
    %229 = vmatprep.subr.mxu0 0.0
    %230 = vmatpush2.msra.mxu0 0.0
    %231 = vmatprep.subr.mxu0 0.0
    %232 = vmatpush2.msra.mxu0 0.0
    %233 = vmatprep.subr.mxu0 0.0
    %234 = vmatpush2.msra.mxu0 0.0
    %235 = vmatprep.subr.mxu0 0.0
    %236 = vmatpush2.msra.mxu0 0.0
    %237 = vmatprep.subr.mxu0 0.0
    %238 = vmatpush2.msra.mxu0 0.0
    %239 = vmatprep.subr.mxu0 0.0
    %240 = vmatpush2.msra.mxu0 0.0
    %241 = vmatprep.subr.mxu0 0.0
    %242 = vmatpush2.msra.mxu0 0.0
    %243 = vmatprep.subr.mxu0 0.0
    %244 = vmatpush2.msra.mxu0 0.0
    %245 = vmatprep.subr.mxu0 0.0
    %246 = vmatpush2.msra.mxu0 0.0
    %247 = vmatprep.subr.mxu0 0.0
    %248 = vmatpush2.msra.mxu0 0.0
    %249 = vmatprep.subr.mxu0 0.0
    %250 = vmatpush2.msra.mxu0 0.0
    %251 = vmatprep.subr.mxu0 0.0
    %252 = vmatpush2.msra.mxu0 0.0
    %253 = vmatprep.subr.mxu0 0.0
    %254 = vmatpush2.msra.mxu0 0.0
    %255 = vmatprep.mubr.f32.mxu0 0.0
    %v256 = vand.u32 %v77, 4294901760
    %257 = vmatmul.mubr.f32.gmra.mxu0 %v256
    %v258 = vpop.f32.mrf.mxu0
    %v259 = vadd.f32 %v158, %v258
    %v260 = vpop.f32.mrf.mxu0
    %261 = vmatprep.mubr.f32.mxu0 0.0
    %v262 = vand.u32 %v80, 4294901760
    %263 = vmatmul.mubr.f32.gmra.mxu0 %v262
    %v264 = vpop.f32.mrf.mxu0
    %v265 = vadd.f32 %v168, %v264
    %v266 = vpop.f32.mrf.mxu0
    %267 = vdwg.mxu0
    %268 = vmatprep.subr.mxu0 0.0
    %269 = vmatpush1.msra.mxu0 0.0
    %270 = vmatprep.subr.mxu0 0.0
    %271 = vmatpush1.msra.mxu0 0.0
    %272 = vmatprep.subr.mxu0 0.0
    %273 = vmatpush1.msra.mxu0 0.0
    %274 = vmatprep.subr.mxu0 0.0
    %275 = vmatpush1.msra.mxu0 0.0
    %276 = vmatprep.subr.mxu0 0.0
    %277 = vmatpush1.msra.mxu0 0.0
    %278 = vmatprep.subr.mxu0 0.0
    %279 = vmatpush1.msra.mxu0 0.0
    %280 = vmatprep.subr.mxu0 0.0
    %281 = vmatpush1.msra.mxu0 0.0
    %282 = vmatprep.subr.mxu0 0.0
    %283 = vmatpush1.msra.mxu0 0.0
    %284 = vmatprep.subr.mxu0 0.0
    %285 = vmatpush1.msra.mxu0 0.0
    %286 = vmatprep.subr.mxu0 0.0
    %287 = vmatpush1.msra.mxu0 0.0
    %288 = vmatprep.subr.mxu0 0.0
    %289 = vmatpush1.msra.mxu0 0.0
    %290 = vmatprep.subr.mxu0 0.0
    %291 = vmatpush1.msra.mxu0 0.0
    %292 = vmatprep.subr.mxu0 0.0
    %v293 = vand.u32 %v67, 4294901760
    %v294 = vsub.f32 %v67, %v293
    %295 = vmatpush1.msra.mxu0 %v294
    %296 = vmatprep.subr.mxu0 0.0
    %v297 = vand.u32 %v66, 4294901760
    %v298 = vsub.f32 %v66, %v297
    %299 = vmatpush1.msra.mxu0 %v298
    %300 = vmatprep.subr.mxu0 0.0
    %v301 = vand.u32 %v65, 4294901760
    %v302 = vsub.f32 %v65, %v301
    %303 = vmatpush1.msra.mxu0 %v302
    %304 = vmatprep.subr.mxu0 0.0
    %v305 = vand.u32 %v64, 4294901760
    %v306 = vsub.f32 %v64, %v305
    %307 = vmatpush1.msra.mxu0 %v306
    %308 = vmatprep.subr.mxu0 0.0
    %309 = vmatpush2.msra.mxu0 0.0
    %310 = vmatprep.subr.mxu0 0.0
    %311 = vmatpush2.msra.mxu0 0.0
    %312 = vmatprep.subr.mxu0 0.0
    %313 = vmatpush2.msra.mxu0 0.0
    %314 = vmatprep.subr.mxu0 0.0
    %315 = vmatpush2.msra.mxu0 0.0
    %316 = vmatprep.subr.mxu0 0.0
    %317 = vmatpush2.msra.mxu0 0.0
    %318 = vmatprep.subr.mxu0 0.0
    %319 = vmatpush2.msra.mxu0 0.0
    %320 = vmatprep.subr.mxu0 0.0
    %321 = vmatpush2.msra.mxu0 0.0
    %322 = vmatprep.subr.mxu0 0.0
    %323 = vmatpush2.msra.mxu0 0.0
    %324 = vmatprep.subr.mxu0 0.0
    %325 = vmatpush2.msra.mxu0 0.0
    %326 = vmatprep.subr.mxu0 0.0
    %327 = vmatpush2.msra.mxu0 0.0
    %328 = vmatprep.subr.mxu0 0.0
    %329 = vmatpush2.msra.mxu0 0.0
    %330 = vmatprep.subr.mxu0 0.0
    %331 = vmatpush2.msra.mxu0 0.0
    %332 = vmatprep.subr.mxu0 0.0
    %333 = vmatpush2.msra.mxu0 0.0
    %334 = vmatprep.subr.mxu0 0.0
    %335 = vmatpush2.msra.mxu0 0.0
    %336 = vmatprep.subr.mxu0 0.0
    %337 = vmatpush2.msra.mxu0 0.0
    %338 = vmatprep.subr.mxu0 0.0
    %339 = vmatpush2.msra.mxu0 0.0
    %340 = vmatprep.mubr.f32.mxu0 0.0
    %v341 = vand.u32 %v77, 4294901760
    %v342 = vsub.f32 %v77, %v341
    %343 = vmatmul.mubr.f32.gmra.mxu0 %v342
    %v344 = vpop.f32.mrf.mxu0
    %v345 = vadd.f32 %v259, %v344
    %v346 = vpop.f32.mrf.mxu0
    %347 = vmatprep.mubr.f32.mxu0 0.0
    %v348 = vand.u32 %v80, 4294901760
    %v349 = vsub.f32 %v80, %v348
    %350 = vmatmul.mubr.f32.gmra.mxu0 %v349
    %v351 = vpop.f32.mrf.mxu0
    %v352 = vadd.f32 %v265, %v351
    %v353 = vpop.f32.mrf.mxu0
    %354 = vdwg.mxu0
    %355 = vmatprep.subr.mxu0 0.0
    %356 = vmatpush1.msra.mxu0 0.0
    %357 = vmatprep.subr.mxu0 0.0
    %358 = vmatpush1.msra.mxu0 0.0
    %359 = vmatprep.subr.mxu0 0.0
    %360 = vmatpush1.msra.mxu0 0.0
    %361 = vmatprep.subr.mxu0 0.0
    %362 = vmatpush1.msra.mxu0 0.0
    %363 = vmatprep.subr.mxu0 0.0
    %364 = vmatpush1.msra.mxu0 0.0
    %365 = vmatprep.subr.mxu0 0.0
    %366 = vmatpush1.msra.mxu0 0.0
    %367 = vmatprep.subr.mxu0 0.0
    %368 = vmatpush1.msra.mxu0 0.0
    %369 = vmatprep.subr.mxu0 0.0
    %370 = vmatpush1.msra.mxu0 0.0
    %371 = vmatprep.subr.mxu0 0.0
    %372 = vmatpush1.msra.mxu0 0.0
    %373 = vmatprep.subr.mxu0 0.0
    %374 = vmatpush1.msra.mxu0 0.0
    %375 = vmatprep.subr.mxu0 0.0
    %376 = vmatpush1.msra.mxu0 0.0
    %377 = vmatprep.subr.mxu0 0.0
    %378 = vmatpush1.msra.mxu0 0.0
    %379 = vmatprep.subr.mxu0 0.0
    %v380 = vand.u32 %v67, 4294901760
    %381 = vmatpush1.msra.mxu0 %v380
    %382 = vmatprep.subr.mxu0 0.0
    %v383 = vand.u32 %v66, 4294901760
    %384 = vmatpush1.msra.mxu0 %v383
    %385 = vmatprep.subr.mxu0 0.0
    %v386 = vand.u32 %v65, 4294901760
    %387 = vmatpush1.msra.mxu0 %v386
    %388 = vmatprep.subr.mxu0 0.0
    %v389 = vand.u32 %v64, 4294901760
    %390 = vmatpush1.msra.mxu0 %v389
    %391 = vmatprep.subr.mxu0 0.0
    %392 = vmatpush2.msra.mxu0 0.0
    %393 = vmatprep.subr.mxu0 0.0
    %394 = vmatpush2.msra.mxu0 0.0
    %395 = vmatprep.subr.mxu0 0.0
    %396 = vmatpush2.msra.mxu0 0.0
    %397 = vmatprep.subr.mxu0 0.0
    %398 = vmatpush2.msra.mxu0 0.0
    %399 = vmatprep.subr.mxu0 0.0
    %400 = vmatpush2.msra.mxu0 0.0
    %401 = vmatprep.subr.mxu0 0.0
    %402 = vmatpush2.msra.mxu0 0.0
    %403 = vmatprep.subr.mxu0 0.0
    %404 = vmatpush2.msra.mxu0 0.0
    %405 = vmatprep.subr.mxu0 0.0
    %406 = vmatpush2.msra.mxu0 0.0
    %407 = vmatprep.subr.mxu0 0.0
    %408 = vmatpush2.msra.mxu0 0.0
    %409 = vmatprep.subr.mxu0 0.0
    %410 = vmatpush2.msra.mxu0 0.0
    %411 = vmatprep.subr.mxu0 0.0
    %412 = vmatpush2.msra.mxu0 0.0
    %413 = vmatprep.subr.mxu0 0.0
    %414 = vmatpush2.msra.mxu0 0.0
    %415 = vmatprep.subr.mxu0 0.0
    %416 = vmatpush2.msra.mxu0 0.0
    %417 = vmatprep.subr.mxu0 0.0
    %418 = vmatpush2.msra.mxu0 0.0
    %419 = vmatprep.subr.mxu0 0.0
    %420 = vmatpush2.msra.mxu0 0.0
    %421 = vmatprep.subr.mxu0 0.0
    %422 = vmatpush2.msra.mxu0 0.0
    %423 = vmatprep.mubr.f32.mxu0 0.0
    %v424 = vand.u32 %v77, 4294901760
    %v425 = vsub.f32 %v77, %v424
    %v426 = vand.u32 %v425, 4294901760
    %427 = vmatmul.mubr.f32.gmra.mxu0 %v426
    %v428 = vpop.f32.mrf.mxu0
    %v429 = vadd.f32 %v345, %v428
    %v430 = vpop.f32.mrf.mxu0
    %431 = vmatprep.mubr.f32.mxu0 0.0
    %v432 = vand.u32 %v80, 4294901760
    %v433 = vsub.f32 %v80, %v432
    %v434 = vand.u32 %v433, 4294901760
    %435 = vmatmul.mubr.f32.gmra.mxu0 %v434
    %v436 = vpop.f32.mrf.mxu0
    %v437 = vadd.f32 %v352, %v436
    %v438 = vpop.f32.mrf.mxu0
    %439 = vdwg.mxu0
    %440 = vmatprep.subr.mxu0 0.0
    %441 = vmatpush1.msra.mxu0 0.0
    %442 = vmatprep.subr.mxu0 0.0
    %443 = vmatpush1.msra.mxu0 0.0
    %444 = vmatprep.subr.mxu0 0.0
    %445 = vmatpush1.msra.mxu0 0.0
    %446 = vmatprep.subr.mxu0 0.0
    %447 = vmatpush1.msra.mxu0 0.0
    %448 = vmatprep.subr.mxu0 0.0
    %449 = vmatpush1.msra.mxu0 0.0
    %450 = vmatprep.subr.mxu0 0.0
    %451 = vmatpush1.msra.mxu0 0.0
    %452 = vmatprep.subr.mxu0 0.0
    %453 = vmatpush1.msra.mxu0 0.0
    %454 = vmatprep.subr.mxu0 0.0
    %455 = vmatpush1.msra.mxu0 0.0
    %456 = vmatprep.subr.mxu0 0.0
    %457 = vmatpush1.msra.mxu0 0.0
    %458 = vmatprep.subr.mxu0 0.0
    %459 = vmatpush1.msra.mxu0 0.0
    %460 = vmatprep.subr.mxu0 0.0
    %461 = vmatpush1.msra.mxu0 0.0
    %462 = vmatprep.subr.mxu0 0.0
    %463 = vmatpush1.msra.mxu0 0.0
    %464 = vmatprep.subr.mxu0 0.0
    %v465 = vand.u32 %v67, 4294901760
    %v466 = vsub.f32 %v67, %v465
    %v467 = vand.u32 %v466, 4294901760
    %468 = vmatpush1.msra.mxu0 %v467
    %469 = vmatprep.subr.mxu0 0.0
    %v470 = vand.u32 %v66, 4294901760
    %v471 = vsub.f32 %v66, %v470
    %v472 = vand.u32 %v471, 4294901760
    %473 = vmatpush1.msra.mxu0 %v472
    %474 = vmatprep.subr.mxu0 0.0
    %v475 = vand.u32 %v65, 4294901760
    %v476 = vsub.f32 %v65, %v475
    %v477 = vand.u32 %v476, 4294901760
    %478 = vmatpush1.msra.mxu0 %v477
    %479 = vmatprep.subr.mxu0 0.0
    %v480 = vand.u32 %v64, 4294901760
    %v481 = vsub.f32 %v64, %v480
    %v482 = vand.u32 %v481, 4294901760
    %483 = vmatpush1.msra.mxu0 %v482
    %484 = vmatprep.subr.mxu0 0.0
    %485 = vmatpush2.msra.mxu0 0.0
    %486 = vmatprep.subr.mxu0 0.0
    %487 = vmatpush2.msra.mxu0 0.0
    %488 = vmatprep.subr.mxu0 0.0
    %489 = vmatpush2.msra.mxu0 0.0
    %490 = vmatprep.subr.mxu0 0.0
    %491 = vmatpush2.msra.mxu0 0.0
    %492 = vmatprep.subr.mxu0 0.0
    %493 = vmatpush2.msra.mxu0 0.0
    %494 = vmatprep.subr.mxu0 0.0
    %495 = vmatpush2.msra.mxu0 0.0
    %496 = vmatprep.subr.mxu0 0.0
    %497 = vmatpush2.msra.mxu0 0.0
    %498 = vmatprep.subr.mxu0 0.0
    %499 = vmatpush2.msra.mxu0 0.0
    %500 = vmatprep.subr.mxu0 0.0
    %501 = vmatpush2.msra.mxu0 0.0
    %502 = vmatprep.subr.mxu0 0.0
    %503 = vmatpush2.msra.mxu0 0.0
    %504 = vmatprep.subr.mxu0 0.0
    %505 = vmatpush2.msra.mxu0 0.0
    %506 = vmatprep.subr.mxu0 0.0
    %507 = vmatpush2.msra.mxu0 0.0
    %508 = vmatprep.subr.mxu0 0.0
    %509 = vmatpush2.msra.mxu0 0.0
    %510 = vmatprep.subr.mxu0 0.0
    %511 = vmatpush2.msra.mxu0 0.0
    %512 = vmatprep.subr.mxu0 0.0
    %513 = vmatpush2.msra.mxu0 0.0
    %514 = vmatprep.subr.mxu0 0.0
    %515 = vmatpush2.msra.mxu0 0.0
    %516 = vmatprep.mubr.f32.mxu0 0.0
    %v517 = vand.u32 %v77, 4294901760
    %518 = vmatmul.mubr.f32.gmra.mxu0 %v517
    %v519 = vpop.f32.mrf.mxu0
    %v520 = vadd.f32 %v429, %v519
    %v521 = vpop.f32.mrf.mxu0
    %522 = vmatprep.mubr.f32.mxu0 0.0
    %v523 = vand.u32 %v80, 4294901760
    %524 = vmatmul.mubr.f32.gmra.mxu0 %v523
    %v525 = vpop.f32.mrf.mxu0
    %v526 = vadd.f32 %v437, %v525
    %v527 = vpop.f32.mrf.mxu0
    %528 = vdwg.mxu0
    %529 = vmatprep.subr.mxu0 0.0
    %530 = vmatpush1.msra.mxu0 0.0
    %531 = vmatprep.subr.mxu0 0.0
    %532 = vmatpush1.msra.mxu0 0.0
    %533 = vmatprep.subr.mxu0 0.0
    %534 = vmatpush1.msra.mxu0 0.0
    %535 = vmatprep.subr.mxu0 0.0
    %536 = vmatpush1.msra.mxu0 0.0
    %537 = vmatprep.subr.mxu0 0.0
    %538 = vmatpush1.msra.mxu0 0.0
    %539 = vmatprep.subr.mxu0 0.0
    %540 = vmatpush1.msra.mxu0 0.0
    %541 = vmatprep.subr.mxu0 0.0
    %542 = vmatpush1.msra.mxu0 0.0
    %543 = vmatprep.subr.mxu0 0.0
    %544 = vmatpush1.msra.mxu0 0.0
    %545 = vmatprep.subr.mxu0 0.0
    %546 = vmatpush1.msra.mxu0 0.0
    %547 = vmatprep.subr.mxu0 0.0
    %548 = vmatpush1.msra.mxu0 0.0
    %549 = vmatprep.subr.mxu0 0.0
    %550 = vmatpush1.msra.mxu0 0.0
    %551 = vmatprep.subr.mxu0 0.0
    %552 = vmatpush1.msra.mxu0 0.0
    %553 = vmatprep.subr.mxu0 0.0
    %v554 = vand.u32 %v67, 4294901760
    %555 = vmatpush1.msra.mxu0 %v554
    %556 = vmatprep.subr.mxu0 0.0
    %v557 = vand.u32 %v66, 4294901760
    %558 = vmatpush1.msra.mxu0 %v557
    %559 = vmatprep.subr.mxu0 0.0
    %v560 = vand.u32 %v65, 4294901760
    %561 = vmatpush1.msra.mxu0 %v560
    %562 = vmatprep.subr.mxu0 0.0
    %v563 = vand.u32 %v64, 4294901760
    %564 = vmatpush1.msra.mxu0 %v563
    %565 = vmatprep.subr.mxu0 0.0
    %566 = vmatpush2.msra.mxu0 0.0
    %567 = vmatprep.subr.mxu0 0.0
    %568 = vmatpush2.msra.mxu0 0.0
    %569 = vmatprep.subr.mxu0 0.0
    %570 = vmatpush2.msra.mxu0 0.0
    %571 = vmatprep.subr.mxu0 0.0
    %572 = vmatpush2.msra.mxu0 0.0
    %573 = vmatprep.subr.mxu0 0.0
    %574 = vmatpush2.msra.mxu0 0.0
    %575 = vmatprep.subr.mxu0 0.0
    %576 = vmatpush2.msra.mxu0 0.0
    %577 = vmatprep.subr.mxu0 0.0
    %578 = vmatpush2.msra.mxu0 0.0
    %579 = vmatprep.subr.mxu0 0.0
    %580 = vmatpush2.msra.mxu0 0.0
    %581 = vmatprep.subr.mxu0 0.0
    %582 = vmatpush2.msra.mxu0 0.0
    %583 = vmatprep.subr.mxu0 0.0
    %584 = vmatpush2.msra.mxu0 0.0
    %585 = vmatprep.subr.mxu0 0.0
    %586 = vmatpush2.msra.mxu0 0.0
    %587 = vmatprep.subr.mxu0 0.0
    %588 = vmatpush2.msra.mxu0 0.0
    %589 = vmatprep.subr.mxu0 0.0
    %590 = vmatpush2.msra.mxu0 0.0
    %591 = vmatprep.subr.mxu0 0.0
    %592 = vmatpush2.msra.mxu0 0.0
    %593 = vmatprep.subr.mxu0 0.0
    %594 = vmatpush2.msra.mxu0 0.0
    %595 = vmatprep.subr.mxu0 0.0
    %596 = vmatpush2.msra.mxu0 0.0
    %597 = vmatprep.mubr.f32.mxu0 0.0
    %v598 = vand.u32 %v77, 4294901760
    %599 = vmatmul.mubr.f32.gmra.mxu0 %v598
    %v600 = vpop.f32.mrf.mxu0
    %v601 = vadd.f32 %v520, %v600
    %v602 = vpop.f32.mrf.mxu0
    %603 = vmatprep.mubr.f32.mxu0 0.0
    %v604 = vand.u32 %v80, 4294901760
    %605 = vmatmul.mubr.f32.gmra.mxu0 %v604
    %v606 = vpop.f32.mrf.mxu0
    %v607 = vadd.f32 %v526, %v606
    %v608 = vpop.f32.mrf.mxu0
    %609 = vdwg.mxu0
    %v610 = vxor.u32 %v601, 2147483648
    %v611 = vxor.u32 %v607, 2147483648
    %v612 = vmul.f32 %v610, 1.442695
    %v613 = vpow.pop %v612
    %v614 = vmul.f32 %v611, 1.442695
    %v615 = vpow.pop %v614
    %v616 = vadd.f32 %v613, 1.0
    %v617 = vadd.f32 %v615, 1.0
    %v618 = vrcp.pop %v616
    %v619 = vmul.f32 1.0, %v618
    %v620 = vrcp.pop %v617
    %v621 = vmul.f32 1.0, %v620
    %v622 = vmul.f32 %v601, %v619
    %v623 = vmul.f32 %v607, %v621
    %v624 = vld [vmem:[#allocation7] sm:$0xff]
    %v625 = vld [vmem:[#allocation7 + $0x8] sm:$0xff]
    %v626 = vld [vmem:[#allocation7 + $0x10] sm:$0xff]
    %v627 = vld [vmem:[#allocation7 + $0x18] sm:$0xff]
    %v628 = vld [vmem:[#allocation7 + $0x20] sm:$0xff]
    %v629 = vld [vmem:[#allocation7 + $0x28] sm:$0xff]
    %v630 = vld [vmem:[#allocation7 + $0x30] sm:$0xff]
    %v631 = vld [vmem:[#allocation7 + $0x38] sm:$0xff]
    %v632 = vld [vmem:[%s4] sm:$0x1]
    %v634 = vlaneseq
    %v635 = vshrl.u32 %v634, 7
    %v636 = vsub.s32 0, %v635
    %v637 = vrot.slane %v632, %v636
    %vm639 = vcmask 523264
    %v641 = vsel %vm639, %v622, 0
    %v644 = vsel %vm639, %v623, 0
    %646 = vmatprep.subr.mxu0 0.0
    %647 = vmatpush1.msra.mxu0 0.0
    %648 = vmatprep.subr.mxu0 0.0
    %649 = vmatpush1.msra.mxu0 0.0
    %650 = vmatprep.subr.mxu0 0.0
    %651 = vmatpush1.msra.mxu0 0.0
    %652 = vmatprep.subr.mxu0 0.0
    %653 = vmatpush1.msra.mxu0 0.0
    %654 = vmatprep.subr.mxu0 0.0
    %655 = vmatpush1.msra.mxu0 0.0
    %656 = vmatprep.subr.mxu0 0.0
    %657 = vmatpush1.msra.mxu0 0.0
    %658 = vmatprep.subr.mxu0 0.0
    %659 = vmatpush1.msra.mxu0 0.0
    %660 = vmatprep.subr.mxu0 0.0
    %661 = vmatpush1.msra.mxu0 0.0
    %662 = vmatprep.subr.mxu0 0.0
    %v663 = vand.u32 %v631, 4294901760
    %664 = vmatpush1.msra.mxu0 %v663
    %665 = vmatprep.subr.mxu0 0.0
    %v666 = vand.u32 %v630, 4294901760
    %667 = vmatpush1.msra.mxu0 %v666
    %668 = vmatprep.subr.mxu0 0.0
    %v669 = vand.u32 %v629, 4294901760
    %670 = vmatpush1.msra.mxu0 %v669
    %671 = vmatprep.subr.mxu0 0.0
    %v672 = vand.u32 %v628, 4294901760
    %673 = vmatpush1.msra.mxu0 %v672
    %674 = vmatprep.subr.mxu0 0.0
    %v675 = vand.u32 %v627, 4294901760
    %676 = vmatpush1.msra.mxu0 %v675
    %677 = vmatprep.subr.mxu0 0.0
    %v678 = vand.u32 %v626, 4294901760
    %679 = vmatpush1.msra.mxu0 %v678
    %680 = vmatprep.subr.mxu0 0.0
    %v681 = vand.u32 %v625, 4294901760
    %682 = vmatpush1.msra.mxu0 %v681
    %683 = vmatprep.subr.mxu0 0.0
    %v684 = vand.u32 %v624, 4294901760
    %685 = vmatpush1.msra.mxu0 %v684
    %686 = vmatprep.subr.mxu0 0.0
    %687 = vmatpush2.msra.mxu0 0.0
    %688 = vmatprep.subr.mxu0 0.0
    %689 = vmatpush2.msra.mxu0 0.0
    %690 = vmatprep.subr.mxu0 0.0
    %691 = vmatpush2.msra.mxu0 0.0
    %692 = vmatprep.subr.mxu0 0.0
    %693 = vmatpush2.msra.mxu0 0.0
    %694 = vmatprep.subr.mxu0 0.0
    %695 = vmatpush2.msra.mxu0 0.0
    %696 = vmatprep.subr.mxu0 0.0
    %697 = vmatpush2.msra.mxu0 0.0
    %698 = vmatprep.subr.mxu0 0.0
    %699 = vmatpush2.msra.mxu0 0.0
    %700 = vmatprep.subr.mxu0 0.0
    %701 = vmatpush2.msra.mxu0 0.0
    %702 = vmatprep.subr.mxu0 0.0
    %703 = vmatpush2.msra.mxu0 0.0
    %704 = vmatprep.subr.mxu0 0.0
    %705 = vmatpush2.msra.mxu0 0.0
    %706 = vmatprep.subr.mxu0 0.0
    %707 = vmatpush2.msra.mxu0 0.0
    %708 = vmatprep.subr.mxu0 0.0
    %709 = vmatpush2.msra.mxu0 0.0
    %710 = vmatprep.subr.mxu0 0.0
    %711 = vmatpush2.msra.mxu0 0.0
    %712 = vmatprep.subr.mxu0 0.0
    %713 = vmatpush2.msra.mxu0 0.0
    %714 = vmatprep.subr.mxu0 0.0
    %715 = vmatpush2.msra.mxu0 0.0
    %716 = vmatprep.subr.mxu0 0.0
    %717 = vmatpush2.msra.mxu0 0.0
    %718 = vmatprep.mubr.f32.mxu0 0.0
    %v719 = vand.u32 %v641, 4294901760
    %v720 = vsub.f32 %v641, %v719
    %v721 = vand.u32 %v720, 4294901760
    %v722 = vsub.f32 %v720, %v721
    %v723 = vand.u32 %v722, 4294901760
    %724 = vmatmul.mubr.f32.gmra.mxu0 %v723
    %v725 = vpop.f32.mrf.mxu0
    %v726 = vadd.f32 %v637, %v725
    %v727 = vpop.f32.mrf.mxu0
    %728 = vmatprep.mubr.f32.mxu0 0.0
    %v729 = vand.u32 %v644, 4294901760
    %v730 = vsub.f32 %v644, %v729
    %v731 = vand.u32 %v730, 4294901760
    %v732 = vsub.f32 %v730, %v731
    %v733 = vand.u32 %v732, 4294901760
    %734 = vmatmul.mubr.f32.gmra.mxu0 %v733
    %v735 = vpop.f32.mrf.mxu0
    %v736 = vadd.f32 %v637, %v735
    %v737 = vpop.f32.mrf.mxu0
    %738 = vdwg.mxu0
    %739 = vmatprep.subr.mxu0 0.0
    %740 = vmatpush1.msra.mxu0 0.0
    %741 = vmatprep.subr.mxu0 0.0
    %742 = vmatpush1.msra.mxu0 0.0
    %743 = vmatprep.subr.mxu0 0.0
    %744 = vmatpush1.msra.mxu0 0.0
    %745 = vmatprep.subr.mxu0 0.0
    %746 = vmatpush1.msra.mxu0 0.0
    %747 = vmatprep.subr.mxu0 0.0
    %748 = vmatpush1.msra.mxu0 0.0
    %749 = vmatprep.subr.mxu0 0.0
    %750 = vmatpush1.msra.mxu0 0.0
    %751 = vmatprep.subr.mxu0 0.0
    %752 = vmatpush1.msra.mxu0 0.0
    %753 = vmatprep.subr.mxu0 0.0
    %754 = vmatpush1.msra.mxu0 0.0
    %755 = vmatprep.subr.mxu0 0.0
    %v756 = vand.u32 %v631, 4294901760
    %v757 = vsub.f32 %v631, %v756
    %v758 = vand.u32 %v757, 4294901760
    %v759 = vsub.f32 %v757, %v758
    %v760 = vand.u32 %v759, 4294901760
    %761 = vmatpush1.msra.mxu0 %v760
    %762 = vmatprep.subr.mxu0 0.0
    %v763 = vand.u32 %v630, 4294901760
    %v764 = vsub.f32 %v630, %v763
    %v765 = vand.u32 %v764, 4294901760
    %v766 = vsub.f32 %v764, %v765
    %v767 = vand.u32 %v766, 4294901760
    %768 = vmatpush1.msra.mxu0 %v767
    %769 = vmatprep.subr.mxu0 0.0
    %v770 = vand.u32 %v629, 4294901760
    %v771 = vsub.f32 %v629, %v770
    %v772 = vand.u32 %v771, 4294901760
    %v773 = vsub.f32 %v771, %v772
    %v774 = vand.u32 %v773, 4294901760
    %775 = vmatpush1.msra.mxu0 %v774
    %776 = vmatprep.subr.mxu0 0.0
    %v777 = vand.u32 %v628, 4294901760
    %v778 = vsub.f32 %v628, %v777
    %v779 = vand.u32 %v778, 4294901760
    %v780 = vsub.f32 %v778, %v779
    %v781 = vand.u32 %v780, 4294901760
    %782 = vmatpush1.msra.mxu0 %v781
    %783 = vmatprep.subr.mxu0 0.0
    %v784 = vand.u32 %v627, 4294901760
    %v785 = vsub.f32 %v627, %v784
    %v786 = vand.u32 %v785, 4294901760
    %v787 = vsub.f32 %v785, %v786
    %v788 = vand.u32 %v787, 4294901760
    %789 = vmatpush1.msra.mxu0 %v788
    %790 = vmatprep.subr.mxu0 0.0
    %v791 = vand.u32 %v626, 4294901760
    %v792 = vsub.f32 %v626, %v791
    %v793 = vand.u32 %v792, 4294901760
    %v794 = vsub.f32 %v792, %v793
    %v795 = vand.u32 %v794, 4294901760
    %796 = vmatpush1.msra.mxu0 %v795
    %797 = vmatprep.subr.mxu0 0.0
    %v798 = vand.u32 %v625, 4294901760
    %v799 = vsub.f32 %v625, %v798
    %v800 = vand.u32 %v799, 4294901760
    %v801 = vsub.f32 %v799, %v800
    %v802 = vand.u32 %v801, 4294901760
    %803 = vmatpush1.msra.mxu0 %v802
    %804 = vmatprep.subr.mxu0 0.0
    %v805 = vand.u32 %v624, 4294901760
    %v806 = vsub.f32 %v624, %v805
    %v807 = vand.u32 %v806, 4294901760
    %v808 = vsub.f32 %v806, %v807
    %v809 = vand.u32 %v808, 4294901760
    %810 = vmatpush1.msra.mxu0 %v809
    %811 = vmatprep.subr.mxu0 0.0
    %812 = vmatpush2.msra.mxu0 0.0
    %813 = vmatprep.subr.mxu0 0.0
    %814 = vmatpush2.msra.mxu0 0.0
    %815 = vmatprep.subr.mxu0 0.0
    %816 = vmatpush2.msra.mxu0 0.0
    %817 = vmatprep.subr.mxu0 0.0
    %818 = vmatpush2.msra.mxu0 0.0
    %819 = vmatprep.subr.mxu0 0.0
    %820 = vmatpush2.msra.mxu0 0.0
    %821 = vmatprep.subr.mxu0 0.0
    %822 = vmatpush2.msra.mxu0 0.0
    %823 = vmatprep.subr.mxu0 0.0
    %824 = vmatpush2.msra.mxu0 0.0
    %825 = vmatprep.subr.mxu0 0.0
    %826 = vmatpush2.msra.mxu0 0.0
    %827 = vmatprep.subr.mxu0 0.0
    %828 = vmatpush2.msra.mxu0 0.0
    %829 = vmatprep.subr.mxu0 0.0
    %830 = vmatpush2.msra.mxu0 0.0
    %831 = vmatprep.subr.mxu0 0.0
    %832 = vmatpush2.msra.mxu0 0.0
    %833 = vmatprep.subr.mxu0 0.0
    %834 = vmatpush2.msra.mxu0 0.0
    %835 = vmatprep.subr.mxu0 0.0
    %836 = vmatpush2.msra.mxu0 0.0
    %837 = vmatprep.subr.mxu0 0.0
    %838 = vmatpush2.msra.mxu0 0.0
    %839 = vmatprep.subr.mxu0 0.0
    %840 = vmatpush2.msra.mxu0 0.0
    %841 = vmatprep.subr.mxu0 0.0
    %842 = vmatpush2.msra.mxu0 0.0
    %843 = vmatprep.mubr.f32.mxu0 0.0
    %v844 = vand.u32 %v641, 4294901760
    %845 = vmatmul.mubr.f32.gmra.mxu0 %v844
    %v846 = vpop.f32.mrf.mxu0
    %v847 = vadd.f32 %v726, %v846
    %v848 = vpop.f32.mrf.mxu0
    %849 = vmatprep.mubr.f32.mxu0 0.0
    %v850 = vand.u32 %v644, 4294901760
    %851 = vmatmul.mubr.f32.gmra.mxu0 %v850
    %v852 = vpop.f32.mrf.mxu0
    %v853 = vadd.f32 %v736, %v852
    %v854 = vpop.f32.mrf.mxu0
    %855 = vdwg.mxu0
    %856 = vmatprep.subr.mxu0 0.0
    %857 = vmatpush1.msra.mxu0 0.0
    %858 = vmatprep.subr.mxu0 0.0
    %859 = vmatpush1.msra.mxu0 0.0
    %860 = vmatprep.subr.mxu0 0.0
    %861 = vmatpush1.msra.mxu0 0.0
    %862 = vmatprep.subr.mxu0 0.0
    %863 = vmatpush1.msra.mxu0 0.0
    %864 = vmatprep.subr.mxu0 0.0
    %865 = vmatpush1.msra.mxu0 0.0
    %866 = vmatprep.subr.mxu0 0.0
    %867 = vmatpush1.msra.mxu0 0.0
    %868 = vmatprep.subr.mxu0 0.0
    %869 = vmatpush1.msra.mxu0 0.0
    %870 = vmatprep.subr.mxu0 0.0
    %871 = vmatpush1.msra.mxu0 0.0
    %872 = vmatprep.subr.mxu0 0.0
    %v873 = vand.u32 %v631, 4294901760
    %v874 = vsub.f32 %v631, %v873
    %875 = vmatpush1.msra.mxu0 %v874
    %876 = vmatprep.subr.mxu0 0.0
    %v877 = vand.u32 %v630, 4294901760
    %v878 = vsub.f32 %v630, %v877
    %879 = vmatpush1.msra.mxu0 %v878
    %880 = vmatprep.subr.mxu0 0.0
    %v881 = vand.u32 %v629, 4294901760
    %v882 = vsub.f32 %v629, %v881
    %883 = vmatpush1.msra.mxu0 %v882
    %884 = vmatprep.subr.mxu0 0.0
    %v885 = vand.u32 %v628, 4294901760
    %v886 = vsub.f32 %v628, %v885
    %887 = vmatpush1.msra.mxu0 %v886
    %888 = vmatprep.subr.mxu0 0.0
    %v889 = vand.u32 %v627, 4294901760
    %v890 = vsub.f32 %v627, %v889
    %891 = vmatpush1.msra.mxu0 %v890
    %892 = vmatprep.subr.mxu0 0.0
    %v893 = vand.u32 %v626, 4294901760
    %v894 = vsub.f32 %v626, %v893
    %895 = vmatpush1.msra.mxu0 %v894
    %896 = vmatprep.subr.mxu0 0.0
    %v897 = vand.u32 %v625, 4294901760
    %v898 = vsub.f32 %v625, %v897
    %899 = vmatpush1.msra.mxu0 %v898
    %900 = vmatprep.subr.mxu0 0.0
    %v901 = vand.u32 %v624, 4294901760
    %v902 = vsub.f32 %v624, %v901
    %903 = vmatpush1.msra.mxu0 %v902
    %904 = vmatprep.subr.mxu0 0.0
    %905 = vmatpush2.msra.mxu0 0.0
    %906 = vmatprep.subr.mxu0 0.0
    %907 = vmatpush2.msra.mxu0 0.0
    %908 = vmatprep.subr.mxu0 0.0
    %909 = vmatpush2.msra.mxu0 0.0
    %910 = vmatprep.subr.mxu0 0.0
    %911 = vmatpush2.msra.mxu0 0.0
    %912 = vmatprep.subr.mxu0 0.0
    %913 = vmatpush2.msra.mxu0 0.0
    %914 = vmatprep.subr.mxu0 0.0
    %915 = vmatpush2.msra.mxu0 0.0
    %916 = vmatprep.subr.mxu0 0.0
    %917 = vmatpush2.msra.mxu0 0.0
    %918 = vmatprep.subr.mxu0 0.0
    %919 = vmatpush2.msra.mxu0 0.0
    %920 = vmatprep.subr.mxu0 0.0
    %921 = vmatpush2.msra.mxu0 0.0
    %922 = vmatprep.subr.mxu0 0.0
    %923 = vmatpush2.msra.mxu0 0.0
    %924 = vmatprep.subr.mxu0 0.0
    %925 = vmatpush2.msra.mxu0 0.0
    %926 = vmatprep.subr.mxu0 0.0
    %927 = vmatpush2.msra.mxu0 0.0
    %928 = vmatprep.subr.mxu0 0.0
    %929 = vmatpush2.msra.mxu0 0.0
    %930 = vmatprep.subr.mxu0 0.0
    %931 = vmatpush2.msra.mxu0 0.0
    %932 = vmatprep.subr.mxu0 0.0
    %933 = vmatpush2.msra.mxu0 0.0
    %934 = vmatprep.subr.mxu0 0.0
    %935 = vmatpush2.msra.mxu0 0.0
    %936 = vmatprep.mubr.f32.mxu0 0.0
    %v937 = vand.u32 %v641, 4294901760
    %v938 = vsub.f32 %v641, %v937
    %939 = vmatmul.mubr.f32.gmra.mxu0 %v938
    %v940 = vpop.f32.mrf.mxu0
    %v941 = vadd.f32 %v847, %v940
    %v942 = vpop.f32.mrf.mxu0
    %943 = vmatprep.mubr.f32.mxu0 0.0
    %v944 = vand.u32 %v644, 4294901760
    %v945 = vsub.f32 %v644, %v944
    %946 = vmatmul.mubr.f32.gmra.mxu0 %v945
    %v947 = vpop.f32.mrf.mxu0
    %v948 = vadd.f32 %v853, %v947
    %v949 = vpop.f32.mrf.mxu0
    %950 = vdwg.mxu0
    %951 = vmatprep.subr.mxu0 0.0
    %952 = vmatpush1.msra.mxu0 0.0
    %953 = vmatprep.subr.mxu0 0.0
    %954 = vmatpush1.msra.mxu0 0.0
    %955 = vmatprep.subr.mxu0 0.0
    %956 = vmatpush1.msra.mxu0 0.0
    %957 = vmatprep.subr.mxu0 0.0
    %958 = vmatpush1.msra.mxu0 0.0
    %959 = vmatprep.subr.mxu0 0.0
    %960 = vmatpush1.msra.mxu0 0.0
    %961 = vmatprep.subr.mxu0 0.0
    %962 = vmatpush1.msra.mxu0 0.0
    %963 = vmatprep.subr.mxu0 0.0
    %964 = vmatpush1.msra.mxu0 0.0
    %965 = vmatprep.subr.mxu0 0.0
    %966 = vmatpush1.msra.mxu0 0.0
    %967 = vmatprep.subr.mxu0 0.0
    %v968 = vand.u32 %v631, 4294901760
    %969 = vmatpush1.msra.mxu0 %v968
    %970 = vmatprep.subr.mxu0 0.0
    %v971 = vand.u32 %v630, 4294901760
    %972 = vmatpush1.msra.mxu0 %v971
    %973 = vmatprep.subr.mxu0 0.0
    %v974 = vand.u32 %v629, 4294901760
    %975 = vmatpush1.msra.mxu0 %v974
    %976 = vmatprep.subr.mxu0 0.0
    %v977 = vand.u32 %v628, 4294901760
    %978 = vmatpush1.msra.mxu0 %v977
    %979 = vmatprep.subr.mxu0 0.0
    %v980 = vand.u32 %v627, 4294901760
    %981 = vmatpush1.msra.mxu0 %v980
    %982 = vmatprep.subr.mxu0 0.0
    %v983 = vand.u32 %v626, 4294901760
    %984 = vmatpush1.msra.mxu0 %v983
    %985 = vmatprep.subr.mxu0 0.0
    %v986 = vand.u32 %v625, 4294901760
    %987 = vmatpush1.msra.mxu0 %v986
    %988 = vmatprep.subr.mxu0 0.0
    %v989 = vand.u32 %v624, 4294901760
    %990 = vmatpush1.msra.mxu0 %v989
    %991 = vmatprep.subr.mxu0 0.0
    %992 = vmatpush2.msra.mxu0 0.0
    %993 = vmatprep.subr.mxu0 0.0
    %994 = vmatpush2.msra.mxu0 0.0
    %995 = vmatprep.subr.mxu0 0.0
    %996 = vmatpush2.msra.mxu0 0.0
    %997 = vmatprep.subr.mxu0 0.0
    %998 = vmatpush2.msra.mxu0 0.0
    %999 = vmatprep.subr.mxu0 0.0
    %1000 = vmatpush2.msra.mxu0 0.0
    %1001 = vmatprep.subr.mxu0 0.0
    %1002 = vmatpush2.msra.mxu0 0.0
    %1003 = vmatprep.subr.mxu0 0.0
    %1004 = vmatpush2.msra.mxu0 0.0
    %1005 = vmatprep.subr.mxu0 0.0
    %1006 = vmatpush2.msra.mxu0 0.0
    %1007 = vmatprep.subr.mxu0 0.0
    %1008 = vmatpush2.msra.mxu0 0.0
    %1009 = vmatprep.subr.mxu0 0.0
    %1010 = vmatpush2.msra.mxu0 0.0
    %1011 = vmatprep.subr.mxu0 0.0
    %1012 = vmatpush2.msra.mxu0 0.0
    %1013 = vmatprep.subr.mxu0 0.0
    %1014 = vmatpush2.msra.mxu0 0.0
    %1015 = vmatprep.subr.mxu0 0.0
    %1016 = vmatpush2.msra.mxu0 0.0
    %1017 = vmatprep.subr.mxu0 0.0
    %1018 = vmatpush2.msra.mxu0 0.0
    %1019 = vmatprep.subr.mxu0 0.0
    %1020 = vmatpush2.msra.mxu0 0.0
    %1021 = vmatprep.subr.mxu0 0.0
    %1022 = vmatpush2.msra.mxu0 0.0
    %1023 = vmatprep.mubr.f32.mxu0 0.0
    %v1024 = vand.u32 %v641, 4294901760
    %v1025 = vsub.f32 %v641, %v1024
    %v1026 = vand.u32 %v1025, 4294901760
    %1027 = vmatmul.mubr.f32.gmra.mxu0 %v1026
    %v1028 = vpop.f32.mrf.mxu0
    %v1029 = vadd.f32 %v941, %v1028
    %v1030 = vpop.f32.mrf.mxu0
    %1031 = vmatprep.mubr.f32.mxu0 0.0
    %v1032 = vand.u32 %v644, 4294901760
    %v1033 = vsub.f32 %v644, %v1032
    %v1034 = vand.u32 %v1033, 4294901760
    %1035 = vmatmul.mubr.f32.gmra.mxu0 %v1034
    %v1036 = vpop.f32.mrf.mxu0
    %v1037 = vadd.f32 %v948, %v1036
    %v1038 = vpop.f32.mrf.mxu0
    %1039 = vdwg.mxu0
    %1040 = vmatprep.subr.mxu0 0.0
    %1041 = vmatpush1.msra.mxu0 0.0
    %1042 = vmatprep.subr.mxu0 0.0
    %1043 = vmatpush1.msra.mxu0 0.0
    %1044 = vmatprep.subr.mxu0 0.0
    %1045 = vmatpush1.msra.mxu0 0.0
    %1046 = vmatprep.subr.mxu0 0.0
    %1047 = vmatpush1.msra.mxu0 0.0
    %1048 = vmatprep.subr.mxu0 0.0
    %1049 = vmatpush1.msra.mxu0 0.0
    %1050 = vmatprep.subr.mxu0 0.0
    %1051 = vmatpush1.msra.mxu0 0.0
    %1052 = vmatprep.subr.mxu0 0.0
    %1053 = vmatpush1.msra.mxu0 0.0
    %1054 = vmatprep.subr.mxu0 0.0
    %1055 = vmatpush1.msra.mxu0 0.0
    %1056 = vmatprep.subr.mxu0 0.0
    %v1057 = vand.u32 %v631, 4294901760
    %v1058 = vsub.f32 %v631, %v1057
    %v1059 = vand.u32 %v1058, 4294901760
    %1060 = vmatpush1.msra.mxu0 %v1059
    %1061 = vmatprep.subr.mxu0 0.0
    %v1062 = vand.u32 %v630, 4294901760
    %v1063 = vsub.f32 %v630, %v1062
    %v1064 = vand.u32 %v1063, 4294901760
    %1065 = vmatpush1.msra.mxu0 %v1064
    %1066 = vmatprep.subr.mxu0 0.0
    %v1067 = vand.u32 %v629, 4294901760
    %v1068 = vsub.f32 %v629, %v1067
    %v1069 = vand.u32 %v1068, 4294901760
    %1070 = vmatpush1.msra.mxu0 %v1069
    %1071 = vmatprep.subr.mxu0 0.0
    %v1072 = vand.u32 %v628, 4294901760
    %v1073 = vsub.f32 %v628, %v1072
    %v1074 = vand.u32 %v1073, 4294901760
    %1075 = vmatpush1.msra.mxu0 %v1074
    %1076 = vmatprep.subr.mxu0 0.0
    %v1077 = vand.u32 %v627, 4294901760
    %v1078 = vsub.f32 %v627, %v1077
    %v1079 = vand.u32 %v1078, 4294901760
    %1080 = vmatpush1.msra.mxu0 %v1079
    %1081 = vmatprep.subr.mxu0 0.0
    %v1082 = vand.u32 %v626, 4294901760
    %v1083 = vsub.f32 %v626, %v1082
    %v1084 = vand.u32 %v1083, 4294901760
    %1085 = vmatpush1.msra.mxu0 %v1084
    %1086 = vmatprep.subr.mxu0 0.0
    %v1087 = vand.u32 %v625, 4294901760
    %v1088 = vsub.f32 %v625, %v1087
    %v1089 = vand.u32 %v1088, 4294901760
    %1090 = vmatpush1.msra.mxu0 %v1089
    %1091 = vmatprep.subr.mxu0 0.0
    %v1092 = vand.u32 %v624, 4294901760
    %v1093 = vsub.f32 %v624, %v1092
    %v1094 = vand.u32 %v1093, 4294901760
    %1095 = vmatpush1.msra.mxu0 %v1094
    %1096 = vmatprep.subr.mxu0 0.0
    %1097 = vmatpush2.msra.mxu0 0.0
    %1098 = vmatprep.subr.mxu0 0.0
    %1099 = vmatpush2.msra.mxu0 0.0
    %1100 = vmatprep.subr.mxu0 0.0
    %1101 = vmatpush2.msra.mxu0 0.0
    %1102 = vmatprep.subr.mxu0 0.0
    %1103 = vmatpush2.msra.mxu0 0.0
    %1104 = vmatprep.subr.mxu0 0.0
    %1105 = vmatpush2.msra.mxu0 0.0
    %1106 = vmatprep.subr.mxu0 0.0
    %1107 = vmatpush2.msra.mxu0 0.0
    %1108 = vmatprep.subr.mxu0 0.0
    %1109 = vmatpush2.msra.mxu0 0.0
    %1110 = vmatprep.subr.mxu0 0.0
    %1111 = vmatpush2.msra.mxu0 0.0
    %1112 = vmatprep.subr.mxu0 0.0
    %1113 = vmatpush2.msra.mxu0 0.0
    %1114 = vmatprep.subr.mxu0 0.0
    %1115 = vmatpush2.msra.mxu0 0.0
    %1116 = vmatprep.subr.mxu0 0.0
    %1117 = vmatpush2.msra.mxu0 0.0
    %1118 = vmatprep.subr.mxu0 0.0
    %1119 = vmatpush2.msra.mxu0 0.0
    %1120 = vmatprep.subr.mxu0 0.0
    %1121 = vmatpush2.msra.mxu0 0.0
    %1122 = vmatprep.subr.mxu0 0.0
    %1123 = vmatpush2.msra.mxu0 0.0
    %1124 = vmatprep.subr.mxu0 0.0
    %1125 = vmatpush2.msra.mxu0 0.0
    %1126 = vmatprep.subr.mxu0 0.0
    %1127 = vmatpush2.msra.mxu0 0.0
    %1128 = vmatprep.mubr.f32.mxu0 0.0
    %v1129 = vand.u32 %v641, 4294901760
    %1130 = vmatmul.mubr.f32.gmra.mxu0 %v1129
    %v1131 = vpop.f32.mrf.mxu0
    %v1132 = vadd.f32 %v1029, %v1131
    %v1133 = vpop.f32.mrf.mxu0
    %1134 = vmatprep.mubr.f32.mxu0 0.0
    %v1135 = vand.u32 %v644, 4294901760
    %1136 = vmatmul.mubr.f32.gmra.mxu0 %v1135
    %v1137 = vpop.f32.mrf.mxu0
    %v1138 = vadd.f32 %v1037, %v1137
    %v1139 = vpop.f32.mrf.mxu0
    %1140 = vdwg.mxu0
    %1141 = vmatprep.subr.mxu0 0.0
    %1142 = vmatpush1.msra.mxu0 0.0
    %1143 = vmatprep.subr.mxu0 0.0
    %1144 = vmatpush1.msra.mxu0 0.0
    %1145 = vmatprep.subr.mxu0 0.0
    %1146 = vmatpush1.msra.mxu0 0.0
    %1147 = vmatprep.subr.mxu0 0.0
    %1148 = vmatpush1.msra.mxu0 0.0
    %1149 = vmatprep.subr.mxu0 0.0
    %1150 = vmatpush1.msra.mxu0 0.0
    %1151 = vmatprep.subr.mxu0 0.0
    %1152 = vmatpush1.msra.mxu0 0.0
    %1153 = vmatprep.subr.mxu0 0.0
    %1154 = vmatpush1.msra.mxu0 0.0
    %1155 = vmatprep.subr.mxu0 0.0
    %1156 = vmatpush1.msra.mxu0 0.0
    %1157 = vmatprep.subr.mxu0 0.0
    %v1158 = vand.u32 %v631, 4294901760
    %1159 = vmatpush1.msra.mxu0 %v1158
    %1160 = vmatprep.subr.mxu0 0.0
    %v1161 = vand.u32 %v630, 4294901760
    %1162 = vmatpush1.msra.mxu0 %v1161
    %1163 = vmatprep.subr.mxu0 0.0
    %v1164 = vand.u32 %v629, 4294901760
    %1165 = vmatpush1.msra.mxu0 %v1164
    %1166 = vmatprep.subr.mxu0 0.0
    %v1167 = vand.u32 %v628, 4294901760
    %1168 = vmatpush1.msra.mxu0 %v1167
    %1169 = vmatprep.subr.mxu0 0.0
    %v1170 = vand.u32 %v627, 4294901760
    %1171 = vmatpush1.msra.mxu0 %v1170
    %1172 = vmatprep.subr.mxu0 0.0
    %v1173 = vand.u32 %v626, 4294901760
    %1174 = vmatpush1.msra.mxu0 %v1173
    %1175 = vmatprep.subr.mxu0 0.0
    %v1176 = vand.u32 %v625, 4294901760
    %1177 = vmatpush1.msra.mxu0 %v1176
    %1178 = vmatprep.subr.mxu0 0.0
    %v1179 = vand.u32 %v624, 4294901760
    %1180 = vmatpush1.msra.mxu0 %v1179
    %1181 = vmatprep.subr.mxu0 0.0
    %1182 = vmatpush2.msra.mxu0 0.0
    %1183 = vmatprep.subr.mxu0 0.0
    %1184 = vmatpush2.msra.mxu0 0.0
    %1185 = vmatprep.subr.mxu0 0.0
    %1186 = vmatpush2.msra.mxu0 0.0
    %1187 = vmatprep.subr.mxu0 0.0
    %1188 = vmatpush2.msra.mxu0 0.0
    %1189 = vmatprep.subr.mxu0 0.0
    %1190 = vmatpush2.msra.mxu0 0.0
    %1191 = vmatprep.subr.mxu0 0.0
    %1192 = vmatpush2.msra.mxu0 0.0
    %1193 = vmatprep.subr.mxu0 0.0
    %1194 = vmatpush2.msra.mxu0 0.0
    %1195 = vmatprep.subr.mxu0 0.0
    %1196 = vmatpush2.msra.mxu0 0.0
    %1197 = vmatprep.subr.mxu0 0.0
    %1198 = vmatpush2.msra.mxu0 0.0
    %1199 = vmatprep.subr.mxu0 0.0
    %1200 = vmatpush2.msra.mxu0 0.0
    %1201 = vmatprep.subr.mxu0 0.0
    %1202 = vmatpush2.msra.mxu0 0.0
    %1203 = vmatprep.subr.mxu0 0.0
    %1204 = vmatpush2.msra.mxu0 0.0
    %1205 = vmatprep.subr.mxu0 0.0
    %1206 = vmatpush2.msra.mxu0 0.0
    %1207 = vmatprep.subr.mxu0 0.0
    %1208 = vmatpush2.msra.mxu0 0.0
    %1209 = vmatprep.subr.mxu0 0.0
    %1210 = vmatpush2.msra.mxu0 0.0
    %1211 = vmatprep.subr.mxu0 0.0
    %1212 = vmatpush2.msra.mxu0 0.0
    %1213 = vmatprep.mubr.f32.mxu0 0.0
    %v1214 = vand.u32 %v641, 4294901760
    %1215 = vmatmul.mubr.f32.gmra.mxu0 %v1214
    %v1216 = vpop.f32.mrf.mxu0
    %v1217 = vadd.f32 %v1132, %v1216
    %v1218 = vpop.f32.mrf.mxu0
    %1219 = vmatprep.mubr.f32.mxu0 0.0
    %v1220 = vand.u32 %v644, 4294901760
    %1221 = vmatmul.mubr.f32.gmra.mxu0 %v1220
    %v1222 = vpop.f32.mrf.mxu0
    %v1223 = vadd.f32 %v1138, %v1222
    %v1224 = vpop.f32.mrf.mxu0
    %1225 = vdwg.mxu0
    %1226 = vst.msk [vmem:[#allocation8] sm:$0xff] %vm639, %v1217
    %1227 = vst.msk [vmem:[#allocation8 + $0x8] sm:$0xff] %vm639, %v1223
    // Predicated region
    $region34: #{tpu_custom_call.1} parent=1 // pred_check
      _
    $region35: #{tpu_custom_call.1} parent=1 // pred_check_branch
      %1229 = sbr.rel (0) target = $region37
    $region36: #{tpu_custom_call.1} parent=1 // pred_region
      %s1231 = ssub.s32 256, 256
      %1232 = vsyncadd [#allocation4], %s1231
      %s1233 = sshll.u32 [#allocation8], 4
      %s1234 = int_to_ptr.vmem [resolvable:$true] %s1233
      %1239 = dma.vmem_to_hbm [thread:$0]  %s1234, 256, %s5, [#allocation4], 128, 128, 8
    $region37: #{tpu_custom_call.1} parent=1 // pred_fallthru
      _
    // Predicated region
    $region38: #{tpu_custom_call.1} parent=1 // pred_check
      _
    $region39: #{tpu_custom_call.1} parent=1 // pred_check_branch
      %1241 = sbr.rel (0) target = $region41
    $region40: #{tpu_custom_call.1} parent=1 // pred_region
      %1242 = dma.done [#allocation4], 256
    $region41: #{tpu_custom_call.1} parent=1 // pred_fallthru
      _
    %1243 = vsyncpa [#allocation3], 1
    %1244 = vsyncpa [#allocation6], 1
    %1245 = vsyncpa [#allocation4], 1

</llo_original>
